<compile_context>
chip_gen: v6e
topology: v6e:2x2x1
jax: 0.10.0
libtpu: 0.0.40
codegen_flags: <defaults>
</compile_context>

<pallas_src>
import functools

import jax
import jax.numpy as jnp
from jax.experimental import pallas as pl
from jax.experimental.pallas import tpu as pltpu

_LANE = 128
_TARGET_BLOCK_BYTES = 2 * 1024 * 1024   # HBM roofline saturates around 1-4 MiB tiles
_MIN_GRID_STEPS = 16                    # >= 8 steps per TensorCore on v7x

# None = untried, True = CORE_PARALLEL lowers/runs on this part, False = fall back.
_CORE_PARALLEL_OK = [None]


def _cdiv(a, b):
    return -(-a // b)


def _round_up(v, m):
    return _cdiv(v, m) * m


def _vmem_limit_bytes():
    """Pipeline VMEM limit derived from the actual part, >=50% headroom
    (v7x: 64 MiB per TensorCore vs 128 MiB on v5e/v6e)."""
    try:
        cap = pltpu.get_tpu_info().vmem_capacity_bytes
    except Exception:
        cap = 64 * 1024 * 1024           # conservative: assume v7x
    return max(16 * 1024 * 1024, min(48 * 1024 * 1024, cap // 2))


def _choose_chw_block(T, chw, itemsize, n_batch):
    """Lane block (multiple of 128) over the flattened c*h*w axis.

    Cap each block at ~_TARGET_BLOCK_BYTES (bigger blocks only serialize the
    in-DMA -> copy -> out-DMA pipeline) and aim for >= _MIN_GRID_STEPS total
    grid steps so prefetch/writeback overlap and both v7x cores get work.
    Sublane padding of the (T, blk) tile is included in the byte accounting.
    """
    t_pad = _round_up(T, 32 // itemsize)          # physical sublanes of the tile
    cap = max(_LANE, (_TARGET_BLOCK_BYTES // (t_pad * itemsize)) // _LANE * _LANE)
    want_chunks = max(1, _cdiv(_MIN_GRID_STEPS, n_batch))
    per_chunk = max(_LANE, _round_up(_cdiv(chw, want_chunks), _LANE))
    blk = min(cap, per_chunk)
    if blk >= chw:
        return chw                                 # single chunk: full extent, no alignment needed
    return blk


def _tsm_kernel(x_ref, o_ref, *, fold_hw, fold2_hw, gen_copy, gen_select):
    """One (batch, lane-chunk) block of the flattened (n_batch, T, c*h*w) tensor.

    Refs have shape (1, T, chw_blk).  The whole T extent is resident, so the
    temporal shift is a row select; channel groups are intervals of the global
    flattened lane index.
    """
    T = x_ref.shape[1]
    lanes = x_ref.shape[2]
    start = pl.program_id(1) * lanes               # global lane offset of this block

    def copy_block():                              # block entirely in passthrough channels
        o_ref[...] = x_ref[...]

    def select_block():                            # block overlaps the shifted channel groups
        idx = start + jax.lax.broadcasted_iota(jnp.int32, (1, lanes), 1)
        in_a = idx < fold_hw                       # channels [0, fold)       -> take t+1
        in_b = idx < fold2_hw                      # with ~in_a: [fold,2fold) -> take t-1
        zero = jnp.zeros((1, lanes), o_ref.dtype)  # only (1, lanes), only at t boundaries
        for t in range(T):                         # static unroll; T is small (2..16)
            xc = x_ref[0, t:t + 1, :]
            xn = x_ref[0, t + 1:t + 2, :] if t + 1 < T else zero
            xp = x_ref[0, t - 1:t, :] if t >= 1 else zero
            o_ref[0, t:t + 1, :] = jnp.where(in_a, xn, jnp.where(in_b, xp, xc))

    if not gen_select:                             # fold == 0: pure copy everywhere
        copy_block()
    elif gen_copy:                                 # most blocks are pure passthrough
        pl.when(start >= fold2_hw)(copy_block)
        pl.when(start < fold2_hw)(select_block)
    else:                                          # every block touches shifted channels
        select_block()


def temporal_shift(x, n_segment, fold_div=8, *, inplace=False):
    """Pallas implementation of TemporalShift.shift (forward).

    x: (nt, c, h, w) with nt = n_batch * n_segment.  `inplace=True` maps the
    PyTorch in-place path to input_output_aliases (identical forward output).
    """
    nt, c, h, w = x.shape
    assert nt % n_segment == 0, "nt must be divisible by n_segment"
    T = n_segment
    n_batch = nt // T
    fold = c // fold_div
    hw = h * w
    chw = c * hw
    itemsize = jnp.dtype(x.dtype).itemsize

    # Metadata-only reshape: lane-dense last axis (biggest single lever for a
    # mem-bound kernel), no transposes, no extra HBM pass.
    xr = x.reshape(n_batch, T, chw)

    chw_blk = _choose_chw_block(T, chw, itemsize, n_batch)
    n_chunks = _cdiv(chw, chw_blk)

    fold_hw = fold * hw
    fold2_hw = 2 * fold * hw
    gen_select = fold > 0
    # Generate the copy fast path only if at least one block is pure passthrough.
    gen_copy = (not gen_select) or (n_chunks > 1 and (n_chunks - 1) * chw_blk >= fold2_hw)

    kernel = functools.partial(_tsm_kernel, fold_hw=fold_hw, fold2_hw=fold2_hw,
                               gen_copy=gen_copy, gen_select=gen_select)
    spec = pl.BlockSpec((1, T, chw_blk), lambda b, s: (b, 0, s))

    def build(dimension_semantics):
        return pl.pallas_call(
            kernel,
            out_shape=jax.ShapeDtypeStruct((n_batch, T, chw), x.dtype),
            grid=(n_batch, n_chunks),
            in_specs=[spec],
            out_specs=spec,
            # Safe only because T is never chunked: each grid step reads and
            # writes exactly its own (b, lane-chunk) region.
            input_output_aliases=({0: 0} if inplace else {}),
            compiler_params=pltpu.CompilerParams(
                dimension_semantics=dimension_semantics,
                vmem_limit_bytes=_vmem_limit_bytes()),
        )
        # Note: deeper buffering (pl.Buffered(3)) on 128-MiB parts was left out
        # to keep lowering maximally portable; default double-buffering suffices
        # at these block sizes.

    # v7x: shard the independent leading grid axis across the two TensorCores.
    # Probed with a fallback so single-core parts / older runtimes run clean.
    if _CORE_PARALLEL_OK[0] is not False:
        try:
            out = build((pltpu.CORE_PARALLEL, pltpu.ARBITRARY))(xr)
            if _CORE_PARALLEL_OK[0] is None:
                jax.block_until_ready(out)     # surface lowering/runtime issues once
            _CORE_PARALLEL_OK[0] = True
            return out.reshape(nt, c, h, w)
        except Exception:
            _CORE_PARALLEL_OK[0] = False
    out = build(("parallel", "arbitrary"))(xr)
    return out.reshape(nt, c, h, w)


class TemporalShift:
    """JAX/Pallas port of the PyTorch TemporalShift module (forward only)."""

    def __init__(self, n_segment=3, n_div=8, inplace=False, second_segments=2):
        self.n_segment = n_segment
        self.fold_div = n_div
        self.inplace = inplace
        self.second_segments = second_segments

    def __call__(self, x, unlabeled):
        seg = self.second_segments if unlabeled else self.n_segment
        return temporal_shift(x, seg, fold_div=self.fold_div, inplace=self.inplace)


def _reference_shift(x, n_segment, fold_div=8):
    """Pure-JAX reference mirroring the PyTorch code exactly."""
    nt, c, h, w = x.shape
    n_batch = nt // n_segment
    xr = x.reshape(n_batch, n_segment, c, h, w)
    fold = c // fold_div
    out = jnp.zeros_like(xr)
    out = out.at[:, :-1, :fold].set(xr[:, 1:, :fold])
    out = out.at[:, 1:, fold:2 * fold].set(xr[:, :-1, fold:2 * fold])
    out = out.at[:, :, 2 * fold:].set(xr[:, :, 2 * fold:])
    return out.reshape(nt, c, h, w)


if __name__ == "__main__":
    key = jax.random.PRNGKey(0)
    k1, k2, k3 = jax.random.split(key, 3)

    # Case 1: module path, f32, c=16 (fold=2), labeled (T=3) and unlabeled (T=2).
    n_segment, second_segments, n_div = 3, 2, 8
    nt, c, h, w = 6, 16, 16, 16
    x = jax.random.normal(k1, (nt, c, h, w), dtype=jnp.float32)
    mod = TemporalShift(n_segment=n_segment, n_div=n_div,
                        inplace=False, second_segments=second_segments)

    y_lab = mod(x, unlabeled=False)
    jax.block_until_ready(y_lab)
    assert y_lab.shape == x.shape and y_lab.dtype == x.dtype
    assert jnp.allclose(y_lab, _reference_shift(x, n_segment, fold_div=n_div)), \
        "labeled path mismatch"

    y_unlab = mod(x, unlabeled=True)
    jax.block_until_ready(y_unlab)
    assert jnp.allclose(y_unlab, _reference_shift(x, second_segments, fold_div=n_div)), \
        "unlabeled path mismatch (ragged lane chunk)"

    # Case 2: bf16, hw = 7*7 (never lane-aligned) -> ragged final lane chunk,
    # a block straddling the fold boundary, and pure-passthrough copy blocks.
    x2 = jax.random.normal(k2, (8, 16, 7, 7), dtype=jnp.bfloat16)
    y2 = temporal_shift(x2, 4, fold_div=8)
    jax.block_until_ready(y2)
    assert jnp.allclose(y2, _reference_shift(x2, 4, fold_div=8)), "bf16/ragged mismatch"

    # Case 2b: fold_div=2 -> no passthrough channels; the ragged final chunk
    # flows through the where-select path.
    y2b = temporal_shift(x2, 4, fold_div=2)
    jax.block_until_ready(y2b)
    assert jnp.allclose(y2b, _reference_shift(x2, 4, fold_div=2)), "fold_div=2 mismatch"

    # Case 3: larger channel count, chunked grid mixing copy and select blocks.
    x3 = jax.random.normal(k3, (8, 64, 8, 8), dtype=jnp.float32)
    y3 = temporal_shift(x3, 4, fold_div=8)
    jax.block_until_ready(y3)
    assert jnp.allclose(y3, _reference_shift(x3, 4, fold_div=8)), "chunked mismatch"

    # Case 4: in-place path via input_output_aliases (reference computed first;
    # x4 is not reused afterwards).
    x4 = x3 + 1.0
    ref4 = _reference_shift(x4, 4, fold_div=8)
    jax.block_until_ready(ref4)
    y4 = temporal_shift(x4, 4, fold_div=8, inplace=True)
    jax.block_until_ready(y4)
    assert jnp.allclose(y4, ref4), "inplace (aliased) mismatch"

    print("KERNEL_OK")
</pallas_src>

<mosaic_0001>
module attributes {stable_mosaic.version = 11 : i64} {
  func.func @_tsm_kernel(%arg0: i32, %arg1: i32, %arg2: memref<1x3x512xf32, #tpu.memory_space<vmem>>, %arg3: memref<1x3x512xf32, #tpu.memory_space<vmem>>) attributes {dimension_semantics = [#tpu.dimension_semantics<core_parallel>, #tpu.dimension_semantics<arbitrary>], iteration_bounds = array<i64: 2, 8>, scalar_prefetch = 0 : i64, scratch_operands = 0 : i64, tpu.core_type = #tpu.core_type<tc>, window_params = [{transform_indices = @transform_0, window_bounds = array<i64: 1, 3, 512>}, {transform_indices = @transform_1, window_bounds = array<i64: 1, 3, 512>}]} {
    %c512_i32 = arith.constant 512 : i32
    %0 = arith.muli %arg1, %c512_i32 : i32
    %c1024_i32 = arith.constant 1024 : i32
    %1 = arith.cmpi sge, %0, %c1024_i32 : i32
    %2 = arith.extui %1 : i1 to i32
    %c0_i32 = arith.constant 0 : i32
    %3 = arith.cmpi ne, %2, %c0_i32 : i32
    scf.if %3 {
      %c0 = arith.constant 0 : index
      %c0_2 = arith.constant 0 : index
      %c0_3 = arith.constant 0 : index
      %7 = vector.load %arg2[%c0, %c0_2, %c0_3] : memref<1x3x512xf32, #tpu.memory_space<vmem>>, vector<1x3x512xf32>
      %c0_4 = arith.constant 0 : index
      %c0_5 = arith.constant 0 : index
      %c0_6 = arith.constant 0 : index
      %8 = vector.load %arg3[%c0_4, %c0_5, %c0_6] : memref<1x3x512xf32, #tpu.memory_space<vmem>>, vector<1x3x512xf32>
      tpu.vector_store %arg3[%c0_4, %c0_5, %c0_6], %7 {strides = array<i32>} : memref<1x3x512xf32, #tpu.memory_space<vmem>>, vector<1x3x512xf32>,
    } else {
    }
    %c1024_i32_0 = arith.constant 1024 : i32
    %4 = arith.cmpi slt, %0, %c1024_i32_0 : i32
    %5 = arith.extui %4 : i1 to i32
    %c0_i32_1 = arith.constant 0 : i32
    %6 = arith.cmpi ne, %5, %c0_i32_1 : i32
    scf.if %6 {
      %7 = tpu.iota {dimensions = array<i32: 1>} : vector<1x512xi32>
      %8 = vector.broadcast %0 : i32 to vector<1x512xi32>
      %9 = arith.addi %8, %7 : vector<1x512xi32>
      %c512_i32_2 = arith.constant 512 : i32
      %10 = vector.broadcast %c512_i32_2 : i32 to vector<1x512xi32>
      %11 = arith.cmpi slt, %9, %10 : vector<1x512xi32>
      %c1024_i32_3 = arith.constant 1024 : i32
      %12 = vector.broadcast %c1024_i32_3 : i32 to vector<1x512xi32>
      %13 = arith.cmpi slt, %9, %12 : vector<1x512xi32>
      %cst = arith.constant 0.000000e+00 : f32
      %14 = vector.broadcast %cst : f32 to vector<1x512xf32>
      %c0 = arith.constant 0 : index
      %c0_4 = arith.constant 0 : index
      %c0_5 = arith.constant 0 : index
      %15 = vector.load %arg2[%c0, %c0_4, %c0_5] : memref<1x3x512xf32, #tpu.memory_space<vmem>>, vector<1x1x512xf32>
      %16 = vector.shape_cast %15 : vector<1x1x512xf32> to vector<1x512xf32>
      %c0_6 = arith.constant 0 : index
      %c1 = arith.constant 1 : index
      %c0_7 = arith.constant 0 : index
      %17 = vector.load %arg2[%c0_6, %c1, %c0_7] : memref<1x3x512xf32, #tpu.memory_space<vmem>>, vector<1x1x512xf32>
      %18 = vector.shape_cast %17 : vector<1x1x512xf32> to vector<1x512xf32>
      %19 = arith.select %13, %14, %16 : vector<1x512xi1>, vector<1x512xf32>
      %20 = arith.select %11, %18, %19 : vector<1x512xi1>, vector<1x512xf32>
      %c0_8 = arith.constant 0 : index
      %c0_9 = arith.constant 0 : index
      %c0_10 = arith.constant 0 : index
      %21 = vector.load %arg3[%c0_8, %c0_9, %c0_10] : memref<1x3x512xf32, #tpu.memory_space<vmem>>, vector<1x1x512xf32>
      %22 = vector.shape_cast %21 : vector<1x1x512xf32> to vector<1x512xf32>
      %23 = vector.shape_cast %20 : vector<1x512xf32> to vector<1x1x512xf32>
      tpu.vector_store %arg3[%c0_8, %c0_9, %c0_10], %23 {strides = array<i32>} : memref<1x3x512xf32, #tpu.memory_space<vmem>>, vector<1x1x512xf32>,
      %c0_11 = arith.constant 0 : index
      %c1_12 = arith.constant 1 : index
      %c0_13 = arith.constant 0 : index
      %24 = vector.load %arg2[%c0_11, %c1_12, %c0_13] : memref<1x3x512xf32, #tpu.memory_space<vmem>>, vector<1x1x512xf32>
      %25 = vector.shape_cast %24 : vector<1x1x512xf32> to vector<1x512xf32>
      %c0_14 = arith.constant 0 : index
      %c2 = arith.constant 2 : index
      %c0_15 = arith.constant 0 : index
      %26 = vector.load %arg2[%c0_14, %c2, %c0_15] : memref<1x3x512xf32, #tpu.memory_space<vmem>>, vector<1x1x512xf32>
      %27 = vector.shape_cast %26 : vector<1x1x512xf32> to vector<1x512xf32>
      %c0_16 = arith.constant 0 : index
      %c0_17 = arith.constant 0 : index
      %c0_18 = arith.constant 0 : index
      %28 = vector.load %arg2[%c0_16, %c0_17, %c0_18] : memref<1x3x512xf32, #tpu.memory_space<vmem>>, vector<1x1x512xf32>
      %29 = vector.shape_cast %28 : vector<1x1x512xf32> to vector<1x512xf32>
      %30 = arith.select %13, %29, %25 : vector<1x512xi1>, vector<1x512xf32>
      %31 = arith.select %11, %27, %30 : vector<1x512xi1>, vector<1x512xf32>
      %c0_19 = arith.constant 0 : index
      %c1_20 = arith.constant 1 : index
      %c0_21 = arith.constant 0 : index
      %32 = vector.load %arg3[%c0_19, %c1_20, %c0_21] : memref<1x3x512xf32, #tpu.memory_space<vmem>>, vector<1x1x512xf32>
      %33 = vector.shape_cast %32 : vector<1x1x512xf32> to vector<1x512xf32>
      %34 = vector.shape_cast %31 : vector<1x512xf32> to vector<1x1x512xf32>
      tpu.vector_store %arg3[%c0_19, %c1_20, %c0_21], %34 {strides = array<i32>} : memref<1x3x512xf32, #tpu.memory_space<vmem>>, vector<1x1x512xf32>,
      %c0_22 = arith.constant 0 : index
      %c2_23 = arith.constant 2 : index
      %c0_24 = arith.constant 0 : index
      %35 = vector.load %arg2[%c0_22, %c2_23, %c0_24] : memref<1x3x512xf32, #tpu.memory_space<vmem>>, vector<1x1x512xf32>
      %36 = vector.shape_cast %35 : vector<1x1x512xf32> to vector<1x512xf32>
      %c0_25 = arith.constant 0 : index
      %c1_26 = arith.constant 1 : index
      %c0_27 = arith.constant 0 : index
      %37 = vector.load %arg2[%c0_25, %c1_26, %c0_27] : memref<1x3x512xf32, #tpu.memory_space<vmem>>, vector<1x1x512xf32>
      %38 = vector.shape_cast %37 : vector<1x1x512xf32> to vector<1x512xf32>
      %39 = arith.select %13, %38, %36 : vector<1x512xi1>, vector<1x512xf32>
      %40 = arith.select %11, %14, %39 : vector<1x512xi1>, vector<1x512xf32>
      %c0_28 = arith.constant 0 : index
      %c2_29 = arith.constant 2 : index
      %c0_30 = arith.constant 0 : index
      %41 = vector.load %arg3[%c0_28, %c2_29, %c0_30] : memref<1x3x512xf32, #tpu.memory_space<vmem>>, vector<1x1x512xf32>
      %42 = vector.shape_cast %41 : vector<1x1x512xf32> to vector<1x512xf32>
      %43 = vector.shape_cast %40 : vector<1x512xf32> to vector<1x1x512xf32>
      tpu.vector_store %arg3[%c0_28, %c2_29, %c0_30], %43 {strides = array<i32>} : memref<1x3x512xf32, #tpu.memory_space<vmem>>, vector<1x1x512xf32>,
    } else {
    }
    return
  }
  func.func @transform_0(%arg0: i32, %arg1: i32) -> (i32, i32, i32) {
    %c0_i32 = arith.constant 0 : i32
    %c0_i32_0 = arith.constant 0 : i32
    return %arg0, %c0_i32, %arg1 : i32, i32, i32
  }
  func.func @transform_1(%arg0: i32, %arg1: i32) -> (i32, i32, i32) {
    %c0_i32 = arith.constant 0 : i32
    %c0_i32_0 = arith.constant 0 : i32
    return %arg0, %c0_i32, %arg1 : i32, i32, i32
  }
}

module attributes {stable_mosaic.version = 11 : i64} {
  func.func @_tsm_kernel(%arg0: i32, %arg1: i32, %arg2: memref<1x3x512xf32, #tpu.memory_space<vmem>>, %arg3: memref<1x3x512xf32, #tpu.memory_space<vmem>>) attributes {dimension_semantics = [#tpu.dimension_semantics<parallel>, #tpu.dimension_semantics<arbitrary>], iteration_bounds = array<i64: 2, 8>, scalar_prefetch = 0 : i64, scratch_operands = 0 : i64, tpu.core_type = #tpu.core_type<tc>, window_params = [{transform_indices = @transform_0, window_bounds = array<i64: 1, 3, 512>}, {transform_indices = @transform_1, window_bounds = array<i64: 1, 3, 512>}]} {
    %c512_i32 = arith.constant 512 : i32
    %0 = arith.muli %arg1, %c512_i32 : i32
    %c1024_i32 = arith.constant 1024 : i32
    %1 = arith.cmpi sge, %0, %c1024_i32 : i32
    %2 = arith.extui %1 : i1 to i32
    %c0_i32 = arith.constant 0 : i32
    %3 = arith.cmpi ne, %2, %c0_i32 : i32
    scf.if %3 {
      %c0 = arith.constant 0 : index
      %c0_2 = arith.constant 0 : index
      %c0_3 = arith.constant 0 : index
      %7 = vector.load %arg2[%c0, %c0_2, %c0_3] : memref<1x3x512xf32, #tpu.memory_space<vmem>>, vector<1x3x512xf32>
      %c0_4 = arith.constant 0 : index
      %c0_5 = arith.constant 0 : index
      %c0_6 = arith.constant 0 : index
      %8 = vector.load %arg3[%c0_4, %c0_5, %c0_6] : memref<1x3x512xf32, #tpu.memory_space<vmem>>, vector<1x3x512xf32>
      tpu.vector_store %arg3[%c0_4, %c0_5, %c0_6], %7 {strides = array<i32>} : memref<1x3x512xf32, #tpu.memory_space<vmem>>, vector<1x3x512xf32>,
    } else {
    }
    %c1024_i32_0 = arith.constant 1024 : i32
    %4 = arith.cmpi slt, %0, %c1024_i32_0 : i32
    %5 = arith.extui %4 : i1 to i32
    %c0_i32_1 = arith.constant 0 : i32
    %6 = arith.cmpi ne, %5, %c0_i32_1 : i32
    scf.if %6 {
      %7 = tpu.iota {dimensions = array<i32: 1>} : vector<1x512xi32>
      %8 = vector.broadcast %0 : i32 to vector<1x512xi32>
      %9 = arith.addi %8, %7 : vector<1x512xi32>
      %c512_i32_2 = arith.constant 512 : i32
      %10 = vector.broadcast %c512_i32_2 : i32 to vector<1x512xi32>
      %11 = arith.cmpi slt, %9, %10 : vector<1x512xi32>
      %c1024_i32_3 = arith.constant 1024 : i32
      %12 = vector.broadcast %c1024_i32_3 : i32 to vector<1x512xi32>
      %13 = arith.cmpi slt, %9, %12 : vector<1x512xi32>
      %cst = arith.constant 0.000000e+00 : f32
      %14 = vector.broadcast %cst : f32 to vector<1x512xf32>
      %c0 = arith.constant 0 : index
      %c0_4 = arith.constant 0 : index
      %c0_5 = arith.constant 0 : index
      %15 = vector.load %arg2[%c0, %c0_4, %c0_5] : memref<1x3x512xf32, #tpu.memory_space<vmem>>, vector<1x1x512xf32>
      %16 = vector.shape_cast %15 : vector<1x1x512xf32> to vector<1x512xf32>
      %c0_6 = arith.constant 0 : index
      %c1 = arith.constant 1 : index
      %c0_7 = arith.constant 0 : index
      %17 = vector.load %arg2[%c0_6, %c1, %c0_7] : memref<1x3x512xf32, #tpu.memory_space<vmem>>, vector<1x1x512xf32>
      %18 = vector.shape_cast %17 : vector<1x1x512xf32> to vector<1x512xf32>
      %19 = arith.select %13, %14, %16 : vector<1x512xi1>, vector<1x512xf32>
      %20 = arith.select %11, %18, %19 : vector<1x512xi1>, vector<1x512xf32>
      %c0_8 = arith.constant 0 : index
      %c0_9 = arith.constant 0 : index
      %c0_10 = arith.constant 0 : index
      %21 = vector.load %arg3[%c0_8, %c0_9, %c0_10] : memref<1x3x512xf32, #tpu.memory_space<vmem>>, vector<1x1x512xf32>
      %22 = vector.shape_cast %21 : vector<1x1x512xf32> to vector<1x512xf32>
      %23 = vector.shape_cast %20 : vector<1x512xf32> to vector<1x1x512xf32>
      tpu.vector_store %arg3[%c0_8, %c0_9, %c0_10], %23 {strides = array<i32>} : memref<1x3x512xf32, #tpu.memory_space<vmem>>, vector<1x1x512xf32>,
      %c0_11 = arith.constant 0 : index
      %c1_12 = arith.constant 1 : index
      %c0_13 = arith.constant 0 : index
      %24 = vector.load %arg2[%c0_11, %c1_12, %c0_13] : memref<1x3x512xf32, #tpu.memory_space<vmem>>, vector<1x1x512xf32>
      %25 = vector.shape_cast %24 : vector<1x1x512xf32> to vector<1x512xf32>
      %c0_14 = arith.constant 0 : index
      %c2 = arith.constant 2 : index
      %c0_15 = arith.constant 0 : index
      %26 = vector.load %arg2[%c0_14, %c2, %c0_15] : memref<1x3x512xf32, #tpu.memory_space<vmem>>, vector<1x1x512xf32>
      %27 = vector.shape_cast %26 : vector<1x1x512xf32> to vector<1x512xf32>
      %c0_16 = arith.constant 0 : index
      %c0_17 = arith.constant 0 : index
      %c0_18 = arith.constant 0 : index
      %28 = vector.load %arg2[%c0_16, %c0_17, %c0_18] : memref<1x3x512xf32, #tpu.memory_space<vmem>>, vector<1x1x512xf32>
      %29 = vector.shape_cast %28 : vector<1x1x512xf32> to vector<1x512xf32>
      %30 = arith.select %13, %29, %25 : vector<1x512xi1>, vector<1x512xf32>
      %31 = arith.select %11, %27, %30 : vector<1x512xi1>, vector<1x512xf32>
      %c0_19 = arith.constant 0 : index
      %c1_20 = arith.constant 1 : index
      %c0_21 = arith.constant 0 : index
      %32 = vector.load %arg3[%c0_19, %c1_20, %c0_21] : memref<1x3x512xf32, #tpu.memory_space<vmem>>, vector<1x1x512xf32>
      %33 = vector.shape_cast %32 : vector<1x1x512xf32> to vector<1x512xf32>
      %34 = vector.shape_cast %31 : vector<1x512xf32> to vector<1x1x512xf32>
      tpu.vector_store %arg3[%c0_19, %c1_20, %c0_21], %34 {strides = array<i32>} : memref<1x3x512xf32, #tpu.memory_space<vmem>>, vector<1x1x512xf32>,
      %c0_22 = arith.constant 0 : index
      %c2_23 = arith.constant 2 : index
      %c0_24 = arith.constant 0 : index
      %35 = vector.load %arg2[%c0_22, %c2_23, %c0_24] : memref<1x3x512xf32, #tpu.memory_space<vmem>>, vector<1x1x512xf32>
      %36 = vector.shape_cast %35 : vector<1x1x512xf32> to vector<1x512xf32>
      %c0_25 = arith.constant 0 : index
      %c1_26 = arith.constant 1 : index
      %c0_27 = arith.constant 0 : index
      %37 = vector.load %arg2[%c0_25, %c1_26, %c0_27] : memref<1x3x512xf32, #tpu.memory_space<vmem>>, vector<1x1x512xf32>
      %38 = vector.shape_cast %37 : vector<1x1x512xf32> to vector<1x512xf32>
      %39 = arith.select %13, %38, %36 : vector<1x512xi1>, vector<1x512xf32>
      %40 = arith.select %11, %14, %39 : vector<1x512xi1>, vector<1x512xf32>
      %c0_28 = arith.constant 0 : index
      %c2_29 = arith.constant 2 : index
      %c0_30 = arith.constant 0 : index
      %41 = vector.load %arg3[%c0_28, %c2_29, %c0_30] : memref<1x3x512xf32, #tpu.memory_space<vmem>>, vector<1x1x512xf32>
      %42 = vector.shape_cast %41 : vector<1x1x512xf32> to vector<1x512xf32>
      %43 = vector.shape_cast %40 : vector<1x512xf32> to vector<1x1x512xf32>
      tpu.vector_store %arg3[%c0_28, %c2_29, %c0_30], %43 {strides = array<i32>} : memref<1x3x512xf32, #tpu.memory_space<vmem>>, vector<1x1x512xf32>,
    } else {
    }
    return
  }
  func.func @transform_0(%arg0: i32, %arg1: i32) -> (i32, i32, i32) {
    %c0_i32 = arith.constant 0 : i32
    %c0_i32_0 = arith.constant 0 : i32
    return %arg0, %c0_i32, %arg1 : i32, i32, i32
  }
  func.func @transform_1(%arg0: i32, %arg1: i32) -> (i32, i32, i32) {
    %c0_i32 = arith.constant 0 : i32
    %c0_i32_0 = arith.constant 0 : i32
    return %arg0, %c0_i32, %arg1 : i32, i32, i32
  }
}

</mosaic_0001>

<llo_original>
// kernel: tpu_custom_call.1
$region0: #{tpu_custom_call.1}
  #allocation0 [shape = 'u32[]', space=smem, size = 0x4, offset = 0x4, fixed_abs, tag = 'smem constant byte address 0x4 - core index']
  #allocation1 [shape = 'u32[144,128]{1,0:T(1,128)}', space=vmem, size = 0x12000, scoped, tag = 'internal scratch']
  %s0 = inlined_call_operand.vmem [shape: f32[2,3,4096], index: 0, kind: input, shape index: {}]
  %s1 = inlined_call_operand.vmem [shape: f32[2,3,4096], index: 1, kind: output, shape index: {}]
  %s2 = sld [smem:[#allocation0]]
  $region45: #{tpu_custom_call.1} parent=0
    _
  %s4 = ssub.s32 1, %s2
  %s5 = scalar_select 0, %s4, %s2
  loop: start=0, step=1, limit=18
  $region2: #{tpu_custom_call.1} parent=0 // loop_pre_header
    _
  $region3: #{tpu_custom_call.1} parent=0 // loop_header
    %s7 = sphi 0, %s11
    %p8 = scmp.ge.s32.totalorder %s7, 18
    %s14 = sphi 0, %s26
    %s15 = sphi 0, %s22
    %s16 = sphi 0, %s14
    %s17 = sphi 0, %s15
    %s18 = sphi 0, %s16
    %s19 = sphi 0, %s17
    %s31 = sphi 0, %s33
    %s34 = sphi 0, %s31
    %s35 = sphi 0, %s34
    %s51 = sphi 0, %s35
    %s59 = sphi 0, %s61
    %s62 = sphi 0, %s59
    %s63 = sphi 0, %s62
    %s79 = sphi 0, %s63
  $region4: #{tpu_custom_call.1} parent=0 // loop_header_branch
    %10 = sbr.rel (%p8) target = $region8
  $region5: #{tpu_custom_call.1} parent=0 // loop_body
    %s12 = ssub.s32 %s7, 1
    %s13 = ssub.s32 %s7, 2
    %s20 = sadd.s32 1, %s15
    %p21 = scmp.ge.s32.totalorder %s20, 8
    %s22 = scalar_select %p21, 0, %s20
    %s23 = sadd.s32 1, %s14
    %s24 = scalar_select %p21, %s23, %s14
    %p25 = scmp.ge.s32.totalorder %s24, 2
    %s26 = scalar_select %p25, 0, %s24
    %s27 = ssub.s32 %s14, %s26
    %s28 = ssub.s32 %s15, %s22
    %s29 = sor.u32 %s27, %s28
    %p30 = scmp.eq.s32.totalorder %s29, 0
    %s32 = sadd.s32 %s31, 1
    %s33 = scalar_select %p30, %s31, %s32
    %p36 = pneg %p30
    %p37 = scmp.eq.s32.totalorder %s7, 15
    %p38 = por %p36, %p37
    %p39 = scmp.ne.s32.totalorder %s31, %s34
    %p40 = scmp.eq.s32.totalorder %s7, 0
    %p41 = por %p39, %p40
    %p42 = scmp.ne.s32.totalorder %s31, %s34
    %p43 = scmp.eq.s32.totalorder %s12, 15
    %p44 = por %p42, %p43
    %p45 = scmp.ne.s32.totalorder %s34, %s35
    %p46 = scmp.eq.s32.totalorder %s12, 0
    %p47 = por %p45, %p46
    %p48 = scmp.ne.s32.totalorder %s34, %s35
    %p49 = scmp.eq.s32.totalorder %s13, 15
    %p50 = por %p48, %p49
    %p52 = scmp.ne.s32.totalorder %s35, %s51
    %p53 = scmp.eq.s32.totalorder %s13, 0
    %p54 = por %p52, %p53
    %s55 = ssub.s32 %s14, %s26
    %s56 = ssub.s32 %s15, %s22
    %s57 = sor.u32 %s55, %s56
    %p58 = scmp.eq.s32.totalorder %s57, 0
    %s60 = sadd.s32 %s59, 1
    %s61 = scalar_select %p58, %s59, %s60
    %p64 = pneg %p58
    %p65 = scmp.eq.s32.totalorder %s7, 15
    %p66 = por %p64, %p65
    %p67 = scmp.ne.s32.totalorder %s59, %s62
    %p68 = scmp.eq.s32.totalorder %s7, 0
    %p69 = por %p67, %p68
    %p70 = scmp.ne.s32.totalorder %s59, %s62
    %p71 = scmp.eq.s32.totalorder %s12, 15
    %p72 = por %p70, %p71
    %p73 = scmp.ne.s32.totalorder %s62, %s63
    %p74 = scmp.eq.s32.totalorder %s12, 0
    %p75 = por %p73, %p74
    %p76 = scmp.ne.s32.totalorder %s62, %s63
    %p77 = scmp.eq.s32.totalorder %s13, 15
    %p78 = por %p76, %p77
    %p80 = scmp.ne.s32.totalorder %s63, %s79
    %p81 = scmp.eq.s32.totalorder %s13, 0
    %p82 = por %p80, %p81
    %p83 = scmp.le.s32.totalorder 1, %s7
    %p84 = scmp.lt.s32.totalorder %s7, 17
    %p85 = pnand %p83, %p84
    %p86 = pneg %p85
    // Predicated region
    $region9: #{tpu_custom_call.1} parent=5 // pred_check
      _
    $region10: #{tpu_custom_call.1} parent=5 // pred_check_branch
      %88 = sbr.rel (%p85) target = $region12
    $region11: #{tpu_custom_call.1} parent=5 // pred_region
      %s89 = ssub.s32 %s7, 1
    $region12: #{tpu_custom_call.1} parent=5 // pred_fallthru
      _
    %p90 = scmp.lt.s32.totalorder %s7, 16
    // Predicated region
    $region13: #{tpu_custom_call.1} parent=5 // pred_check
      %p91 = pneg %p90
    $region14: #{tpu_custom_call.1} parent=5 // pred_check_branch
      %93 = sbr.rel (%p91) target = $region16
    $region15: #{tpu_custom_call.1} parent=5 // pred_region
      // Predicated region
      $region17: #{tpu_custom_call.1} parent=15 // pred_check
        %p94 = pneg %p41
      $region18: #{tpu_custom_call.1} parent=15 // pred_check_branch
        %96 = sbr.rel (%p94) target = $region20
      $region19: #{tpu_custom_call.1} parent=15 // pred_region
        %s97 = smul.u32 4, %s15
        %p98 = scmp.lt.s32.totalorder %s14, 1
        %s99 = scalar_select %p98, %s14, 1
        %p100 = scmp.lt.s32.totalorder %s97, 31
        %s101 = scalar_select %p100, %s97, 31
        %s102 = smul.addr %s99, 32
        %s103 = sadd.s32 %s101, %s102
        %s104 = smul.addr %s103, 4
        %s105 = scalar_lea.vmem %s0, %s104
        %s106 = smul.u32 4, %s15
      $region20: #{tpu_custom_call.1} parent=15 // pred_fallthru
        _
    $region16: #{tpu_custom_call.1} parent=5 // pred_fallthru
      _
    %p107 = scmp.le.s32.totalorder 1, %s7
    %p108 = scmp.lt.s32.totalorder %s7, 17
    %p109 = pnand %p107, %p108
    %p110 = pneg %p109
    // Predicated region
    $region21: #{tpu_custom_call.1} parent=5 // pred_check
      _
    $region22: #{tpu_custom_call.1} parent=5 // pred_check_branch
      %112 = sbr.rel (%p109) target = $region24
    $region23: #{tpu_custom_call.1} parent=5 // pred_region
      %s113 = ssub.s32 %s7, 1
      %s114 = smul.u32 4, %s17
      %p115 = scmp.lt.s32.totalorder %s16, 1
      %s116 = scalar_select %p115, %s16, 1
      %p117 = scmp.lt.s32.totalorder %s114, 31
      %s118 = scalar_select %p117, %s114, 31
      %s119 = smul.addr %s116, 32
      %s120 = sadd.s32 %s118, %s119
      %s121 = smul.addr %s120, 4
      %s122 = scalar_lea.vmem %s0, %s121
      %p123 = pneg %p47
      %p124 = pneg %p44
      %p125 = pneg %p75
      %p126 = pneg %p72
      %s127 = smul.u32 4, %s17
      %p128 = scmp.lt.s32.totalorder %s16, 1
      %s129 = scalar_select %p128, %s16, 1
      %p130 = scmp.lt.s32.totalorder %s127, 31
      %s131 = scalar_select %p130, %s127, 31
      %s132 = smul.addr %s129, 32
      %s133 = sadd.s32 %s131, %s132
      %s134 = smul.addr %s133, 4
      %s135 = scalar_lea.vmem %s1, %s134
      %s136 = smul.u32 4, %s17
      %p137 = scmp.lt.s32.totalorder %s16, 1
      %s138 = scalar_select %p137, %s16, 1
      %p139 = scmp.lt.s32.totalorder %s136, 31
      %s140 = scalar_select %p139, %s136, 31
      %s141 = smul.addr %s138, 32
      %s142 = sadd.s32 %s140, %s141
      %s143 = smul.addr %s142, 4
      %s144 = scalar_lea.vmem %s0, %s143
      %s145 = smul.u32 4, %s17
      %s146 = smul.u32 4, %s17
      %p147 = scmp.lt.s32.totalorder %s16, 1
      %s148 = scalar_select %p147, %s16, 1
      %p149 = scmp.lt.s32.totalorder %s146, 31
      %s150 = scalar_select %p149, %s146, 31
      %s151 = smul.addr %s148, 32
      %s152 = sadd.s32 %s150, %s151
      %s153 = smul.addr %s152, 4
      %s154 = scalar_lea.vmem %s1, %s153
      %s155 = smul.u32 4, %s17
      %s156 = smul.u32 %s17, 512
      %p157 = scmp.ge.s32.totalorder %s156, 1024
      // Predicated region
      $region25: #{tpu_custom_call.1} parent=23 // pred_check
        %p158 = pneg %p157
      $region26: #{tpu_custom_call.1} parent=23 // pred_check_branch
        %160 = sbr.rel (%p158) target = $region28
      $region27: #{tpu_custom_call.1} parent=23 // pred_region
        %v161 = vld [vmem:[%s144] sm:$0x77]
        %v162 = vld [vmem:[%s144 + $0x8] sm:$0x77]
        %163 = vst [vmem:[%s154] sm:$0x77] %v161
        %164 = vst [vmem:[%s154 + $0x8] sm:$0x77] %v162
      $region28: #{tpu_custom_call.1} parent=23 // pred_fallthru
        _
      %p165 = scmp.lt.s32.totalorder %s156, 1024
      // Predicated region
      $region29: #{tpu_custom_call.1} parent=23 // pred_check
        %p166 = pneg %p165
      $region30: #{tpu_custom_call.1} parent=23 // pred_check_branch
        %168 = sbr.rel (%p166) target = $region32
      $region31: #{tpu_custom_call.1} parent=23 // pred_region
        %v169 = vlaneseq
        %v170 = vand.u32 %v169, 127
        %v171 = vadd.s32 %v170, 128
        %v172 = vadd.s32 %v170, 256
        %v173 = vadd.s32 %v170, 384
        %v174 = vstv %s156
        %v175 = vadd.s32 %v174, %v170
        %v176 = vadd.s32 %v174, %v171
        %v177 = vadd.s32 %v174, %v172
        %v178 = vadd.s32 %v174, %v173
        %vm179 = vcmp.lt.s32.totalorder %v175, 512
        %vm180 = vcmp.lt.s32.totalorder %v176, 512
        %vm181 = vcmp.lt.s32.totalorder %v177, 512
        %vm182 = vcmp.lt.s32.totalorder %v178, 512
        %vm183 = vcmp.lt.s32.totalorder %v175, 1024
        %vm184 = vcmp.lt.s32.totalorder %v176, 1024
        %vm185 = vcmp.lt.s32.totalorder %v177, 1024
        %vm186 = vcmp.lt.s32.totalorder %v178, 1024
        %v187 = vld [vmem:[%s144] ss:$4 sm:$0xf]
        %s188 = scalar_lea.vmem %s144, 1
        %v189 = vld [vmem:[%s188] ss:$4 sm:$0xf]
        %v191 = vlaneseq
        %v192 = vshrl.u32 %v191, 7
        %v193 = vsub.s32 0, %v192
        %v194 = vrot.slane %v187, %v193
        %v195 = vlaneseq
        %v196 = vshrl.u32 %v195, 7
        %v197 = vsub.s32 1, %v196
        %v198 = vrot.slane %v187, %v197
        %v199 = vlaneseq
        %v200 = vshrl.u32 %v199, 7
        %v201 = vsub.s32 2, %v200
        %v202 = vrot.slane %v187, %v201
        %v203 = vlaneseq
        %v204 = vshrl.u32 %v203, 7
        %v205 = vsub.s32 3, %v204
        %v206 = vrot.slane %v187, %v205
        %v211 = vsel %vm183, 0.0, %v194
        %v212 = vsel %vm184, 0.0, %v198
        %v213 = vsel %vm185, 0.0, %v202
        %v214 = vsel %vm186, 0.0, %v206
        %v216 = vlaneseq
        %v217 = vshrl.u32 %v216, 7
        %v218 = vsub.s32 0, %v217
        %v219 = vrot.slane %v189, %v218
        %v220 = vlaneseq
        %v221 = vshrl.u32 %v220, 7
        %v222 = vsub.s32 1, %v221
        %v223 = vrot.slane %v189, %v222
        %v224 = vlaneseq
        %v225 = vshrl.u32 %v224, 7
        %v226 = vsub.s32 2, %v225
        %v227 = vrot.slane %v189, %v226
        %v228 = vlaneseq
        %v229 = vshrl.u32 %v228, 7
        %v230 = vsub.s32 3, %v229
        %v231 = vrot.slane %v189, %v230
        %v236 = vsel %vm179, %v219, %v211
        %v237 = vsel %vm180, %v223, %v212
        %v238 = vsel %vm181, %v227, %v213
        %v239 = vsel %vm182, %v231, %v214
        %v244 = vcombine.low %v236, %v237
        %v245 = vcombine.low %v238, %v239
        %v247 = vunpack.c.l.s4 1966171168
        %v248 = vunpack.c.0.s8 %v247
        %v249 = vlaneseq
        %v250 = vshrl.u32 %v249, 7
        %v251 = vsub.s32 %v248, %v250
        %v252 = vrot.slane %v244, %v251
        %v254 = vunpack.c.l.s4 1966171168
        %v255 = vunpack.c.0.s8 %v254
        %v256 = vlaneseq
        %v257 = vshrl.u32 %v256, 7
        %v258 = vsub.s32 %v255, %v257
        %v259 = vrot.slane %v245, %v258
        %v260 = vcombine.low %v252, %v259
        %v262 = vunpack.c.l.s4 1966171168
        %v263 = vunpack.c.0.s8 %v262
        %v264 = vlaneseq
        %v265 = vshrl.u32 %v264, 7
        %v266 = vsub.s32 %v263, %v265
        %v267 = vrot.slane %v260, %v266
        %v269 = vlaneseq
        %vm270 = vcmp.ge.s32.totalorder %v269, 0
        %vm271 = vcmp.lt.s32.totalorder %v269, 512
        %vm272 = vmand %vm270, %vm271
        %273 = vst.msk [vmem:[%s154] ss:$4 sm:$0xf] %vm272, %v267
        %v274 = vld [vmem:[%s188] ss:$4 sm:$0xf]
        %s275 = scalar_lea.vmem %s144, 2
        %v276 = vld [vmem:[%s275] ss:$4 sm:$0xf]
        %v277 = vld [vmem:[%s144] ss:$4 sm:$0xf]
        %v279 = vlaneseq
        %v280 = vshrl.u32 %v279, 7
        %v281 = vsub.s32 0, %v280
        %v282 = vrot.slane %v277, %v281
        %v283 = vlaneseq
        %v284 = vshrl.u32 %v283, 7
        %v285 = vsub.s32 1, %v284
        %v286 = vrot.slane %v277, %v285
        %v287 = vlaneseq
        %v288 = vshrl.u32 %v287, 7
        %v289 = vsub.s32 2, %v288
        %v290 = vrot.slane %v277, %v289
        %v291 = vlaneseq
        %v292 = vshrl.u32 %v291, 7
        %v293 = vsub.s32 3, %v292
        %v294 = vrot.slane %v277, %v293
        %v300 = vlaneseq
        %v301 = vshrl.u32 %v300, 7
        %v302 = vsub.s32 0, %v301
        %v303 = vrot.slane %v274, %v302
        %v304 = vlaneseq
        %v305 = vshrl.u32 %v304, 7
        %v306 = vsub.s32 1, %v305
        %v307 = vrot.slane %v274, %v306
        %v308 = vlaneseq
        %v309 = vshrl.u32 %v308, 7
        %v310 = vsub.s32 2, %v309
        %v311 = vrot.slane %v274, %v310
        %v312 = vlaneseq
        %v313 = vshrl.u32 %v312, 7
        %v314 = vsub.s32 3, %v313
        %v315 = vrot.slane %v274, %v314
        %v320 = vsel %vm183, %v282, %v303
        %v321 = vsel %vm184, %v286, %v307
        %v322 = vsel %vm185, %v290, %v311
        %v323 = vsel %vm186, %v294, %v315
        %v325 = vlaneseq
        %v326 = vshrl.u32 %v325, 7
        %v327 = vsub.s32 0, %v326
        %v328 = vrot.slane %v276, %v327
        %v329 = vlaneseq
        %v330 = vshrl.u32 %v329, 7
        %v331 = vsub.s32 1, %v330
        %v332 = vrot.slane %v276, %v331
        %v333 = vlaneseq
        %v334 = vshrl.u32 %v333, 7
        %v335 = vsub.s32 2, %v334
        %v336 = vrot.slane %v276, %v335
        %v337 = vlaneseq
        %v338 = vshrl.u32 %v337, 7
        %v339 = vsub.s32 3, %v338
        %v340 = vrot.slane %v276, %v339
        %v345 = vsel %vm179, %v328, %v320
        %v346 = vsel %vm180, %v332, %v321
        %v347 = vsel %vm181, %v336, %v322
        %v348 = vsel %vm182, %v340, %v323
        %v353 = vcombine.low %v345, %v346
        %v354 = vcombine.low %v347, %v348
        %v356 = vunpack.c.l.s4 1966171168
        %v357 = vunpack.c.0.s8 %v356
        %v358 = vlaneseq
        %v359 = vshrl.u32 %v358, 7
        %v360 = vsub.s32 %v357, %v359
        %v361 = vrot.slane %v353, %v360
        %v363 = vunpack.c.l.s4 1966171168
        %v364 = vunpack.c.0.s8 %v363
        %v365 = vlaneseq
        %v366 = vshrl.u32 %v365, 7
        %v367 = vsub.s32 %v364, %v366
        %v368 = vrot.slane %v354, %v367
        %v369 = vcombine.low %v361, %v368
        %v371 = vunpack.c.l.s4 1966171168
        %v372 = vunpack.c.0.s8 %v371
        %v373 = vlaneseq
        %v374 = vshrl.u32 %v373, 7
        %v375 = vsub.s32 %v372, %v374
        %v376 = vrot.slane %v369, %v375
        %s378 = scalar_lea.vmem %s154, 1
        %379 = vst.msk [vmem:[%s378] ss:$4 sm:$0xf] %vm272, %v376
        %v380 = vld [vmem:[%s275] ss:$4 sm:$0xf]
        %v381 = vld [vmem:[%s188] ss:$4 sm:$0xf]
        %v383 = vlaneseq
        %v384 = vshrl.u32 %v383, 7
        %v385 = vsub.s32 0, %v384
        %v386 = vrot.slane %v381, %v385
        %v387 = vlaneseq
        %v388 = vshrl.u32 %v387, 7
        %v389 = vsub.s32 1, %v388
        %v390 = vrot.slane %v381, %v389
        %v391 = vlaneseq
        %v392 = vshrl.u32 %v391, 7
        %v393 = vsub.s32 2, %v392
        %v394 = vrot.slane %v381, %v393
        %v395 = vlaneseq
        %v396 = vshrl.u32 %v395, 7
        %v397 = vsub.s32 3, %v396
        %v398 = vrot.slane %v381, %v397
        %v404 = vlaneseq
        %v405 = vshrl.u32 %v404, 7
        %v406 = vsub.s32 0, %v405
        %v407 = vrot.slane %v380, %v406
        %v408 = vlaneseq
        %v409 = vshrl.u32 %v408, 7
        %v410 = vsub.s32 1, %v409
        %v411 = vrot.slane %v380, %v410
        %v412 = vlaneseq
        %v413 = vshrl.u32 %v412, 7
        %v414 = vsub.s32 2, %v413
        %v415 = vrot.slane %v380, %v414
        %v416 = vlaneseq
        %v417 = vshrl.u32 %v416, 7
        %v418 = vsub.s32 3, %v417
        %v419 = vrot.slane %v380, %v418
        %v424 = vsel %vm183, %v386, %v407
        %v425 = vsel %vm184, %v390, %v411
        %v426 = vsel %vm185, %v394, %v415
        %v427 = vsel %vm186, %v398, %v419
        %v428 = vsel %vm179, 0.0, %v424
        %v429 = vsel %vm180, 0.0, %v425
        %v430 = vsel %vm181, 0.0, %v426
        %v431 = vsel %vm182, 0.0, %v427
        %v436 = vcombine.low %v428, %v429
        %v437 = vcombine.low %v430, %v431
        %v439 = vunpack.c.l.s4 1966171168
        %v440 = vunpack.c.0.s8 %v439
        %v441 = vlaneseq
        %v442 = vshrl.u32 %v441, 7
        %v443 = vsub.s32 %v440, %v442
        %v444 = vrot.slane %v436, %v443
        %v446 = vunpack.c.l.s4 1966171168
        %v447 = vunpack.c.0.s8 %v446
        %v448 = vlaneseq
        %v449 = vshrl.u32 %v448, 7
        %v450 = vsub.s32 %v447, %v449
        %v451 = vrot.slane %v437, %v450
        %v452 = vcombine.low %v444, %v451
        %v454 = vunpack.c.l.s4 1966171168
        %v455 = vunpack.c.0.s8 %v454
        %v456 = vlaneseq
        %v457 = vshrl.u32 %v456, 7
        %v458 = vsub.s32 %v455, %v457
        %v459 = vrot.slane %v452, %v458
        %s461 = scalar_lea.vmem %s154, 2
        %462 = vst.msk [vmem:[%s461] ss:$4 sm:$0xf] %vm272, %v459
      $region32: #{tpu_custom_call.1} parent=23 // pred_fallthru
        _
      %s463 = smul.u32 4, %s17
      %p464 = scmp.lt.s32.totalorder %s16, 1
      %s465 = scalar_select %p464, %s16, 1
      %p466 = scmp.lt.s32.totalorder %s463, 31
      %s467 = scalar_select %p466, %s463, 31
      %s468 = smul.addr %s465, 32
      %s469 = sadd.s32 %s467, %s468
      %s470 = smul.addr %s469, 4
      %s471 = scalar_lea.vmem %s1, %s470
      // Predicated region
      $region33: #{tpu_custom_call.1} parent=23 // pred_check
        %p472 = pneg %p72
      $region34: #{tpu_custom_call.1} parent=23 // pred_check_branch
        %474 = sbr.rel (%p472) target = $region36
      $region35: #{tpu_custom_call.1} parent=23 // pred_region
        %s475 = smul.u32 4, %s17
      $region36: #{tpu_custom_call.1} parent=23 // pred_fallthru
        _
    $region24: #{tpu_custom_call.1} parent=5 // pred_fallthru
      _
    %p476 = scmp.le.s32.totalorder 2, %s7
    // Predicated region
    $region37: #{tpu_custom_call.1} parent=5 // pred_check
      %p477 = pneg %p476
    $region38: #{tpu_custom_call.1} parent=5 // pred_check_branch
      %479 = sbr.rel (%p477) target = $region40
    $region39: #{tpu_custom_call.1} parent=5 // pred_region
      %s480 = ssub.s32 %s7, 2
      // Predicated region
      $region41: #{tpu_custom_call.1} parent=39 // pred_check
        %p481 = pneg %p78
      $region42: #{tpu_custom_call.1} parent=39 // pred_check_branch
        %483 = sbr.rel (%p481) target = $region44
      $region43: #{tpu_custom_call.1} parent=39 // pred_region
        %s484 = smul.u32 4, %s19
        %p485 = scmp.lt.s32.totalorder %s18, 1
        %s486 = scalar_select %p485, %s18, 1
        %p487 = scmp.lt.s32.totalorder %s484, 31
        %s488 = scalar_select %p487, %s484, 31
        %s489 = smul.addr %s486, 32
        %s490 = sadd.s32 %s488, %s489
        %s491 = smul.addr %s490, 4
        %s492 = scalar_lea.vmem %s1, %s491
      $region44: #{tpu_custom_call.1} parent=39 // pred_fallthru
        _
    $region40: #{tpu_custom_call.1} parent=5 // pred_fallthru
      _
  $region6: #{tpu_custom_call.1} parent=0 // loop_footer
    %s11 = sadd.s32 1, %s7
  $region7: #{tpu_custom_call.1} parent=0 // loop_footer_branch
    %6 = sbr.rel target = $region3
  $region8: #{tpu_custom_call.1} parent=0 // loop_exit
    _

</llo_original>
